<compile_context>
chip_gen: v7x
topology: tpu7x:2x2x1
jax: 0.10.0
libtpu: 0.0.40
codegen_flags: <defaults>
</compile_context>

<pallas_src>
import functools

import jax
import jax.numpy as jnp
from jax import lax
from jax.experimental import pallas as pl
from jax.experimental.pallas import tpu as pltpu

LANE = 128  # lane-dense padding target for feature / class dims


def _round_up(v, m):
    return ((v + m - 1) // m) * m


def _pad2d(a, rows, cols):
    return jnp.pad(a, ((0, rows - a.shape[0]), (0, cols - a.shape[1])))


def _choose_tile(n_pad, tile_req=512):
    """Largest square tile (multiple of 128) that divides n_pad while keeping at
    least two dst-row tiles, so the 'parallel' grid axis can shard across the two
    TensorCores on v7x (single-TC v5e/v6e are unaffected)."""
    for t in (512, 384, 256, 128):
        if t <= tile_req and n_pad % t == 0 and n_pad // t >= 2:
            return t
    return LANE


def _masked_log_softmax(h, n_valid):
    """log_softmax over the first n_valid lanes; padded lanes pushed to -inf-ish."""
    col = lax.broadcasted_iota(jnp.int32, h.shape, 1)
    valid = col < n_valid
    h = jnp.where(valid, h, -1e30)
    m = jnp.max(h, axis=-1, keepdims=True)
    e = jnp.where(valid, jnp.exp(h - m), 0.0)
    lse = jnp.log(jnp.sum(e, axis=-1, keepdims=True))
    return h - m - lse


# ----------------------------------------------------------------------------
# Kernel 1: per-layer projection  P = X @ W_l (bf16),  R = X @ W_r + b (f32)
# (hoisted out of the N^2 aggregation loop — computed once per row tile)
# ----------------------------------------------------------------------------
def _project_kernel(x_ref, wl_ref, wr_ref, b_ref, p_ref, r_ref):
    x = x_ref[...]                                              # (tile, ci) bf16
    p = jnp.dot(x, wl_ref[...], preferred_element_type=jnp.float32)
    r = jnp.dot(x, wr_ref[...], preferred_element_type=jnp.float32) + b_ref[...]
    p_ref[...] = p.astype(p_ref.dtype)
    r_ref[...] = r.astype(r_ref.dtype)


def sage_project(x_p, w_l, w_r, b, *, tile):
    n_pad, ci = x_p.shape
    co = w_l.shape[1]
    grid = (n_pad // tile,)
    flops = 2 * 2 * n_pad * ci * co
    bytes_acc = (n_pad * ci * 2 + 2 * ci * co * 2 + co * 4
                 + n_pad * co * (2 + 4))
    return pl.pallas_call(
        _project_kernel,
        out_shape=(jax.ShapeDtypeStruct((n_pad, co), jnp.bfloat16),
                   jax.ShapeDtypeStruct((n_pad, co), jnp.float32)),
        grid=grid,
        in_specs=[
            pl.BlockSpec((tile, ci), lambda i: (i, 0)),   # X row panel
            pl.BlockSpec((ci, co), lambda i: (0, 0)),     # W_l (resident)
            pl.BlockSpec((ci, co), lambda i: (0, 0)),     # W_r (resident)
            pl.BlockSpec((1, co), lambda i: (0, 0)),      # b   (resident)
        ],
        out_specs=(pl.BlockSpec((tile, co), lambda i: (i, 0)),
                   pl.BlockSpec((tile, co), lambda i: (i, 0))),
        compiler_params=pltpu.CompilerParams(
            dimension_semantics=("parallel",)),
        cost_estimate=pl.CostEstimate(flops=int(flops), transcendentals=0,
                                      bytes_accessed=int(bytes_acc)),
    )(x_p, w_l, w_r, b)


# ----------------------------------------------------------------------------
# Kernel 2: per-layer aggregation  H = A @ P + R  (+ ReLU or masked log_softmax)
# Grid: (i over dst-row tiles [parallel], k over src tiles [arbitrary])
# ----------------------------------------------------------------------------
def _aggregate_kernel(a_ref, p_ref, r_ref, o_ref, acc_ref, *,
                      final_layer, n_valid_out):
    k = pl.program_id(1)

    @pl.when(k == 0)
    def _():
        acc_ref[...] = jnp.zeros_like(acc_ref)

    # inner body is a single MXU matmul: acc += A_tile @ P_tile
    acc_ref[...] += jnp.dot(a_ref[...], p_ref[...],
                            preferred_element_type=jnp.float32)

    @pl.when(k == pl.num_programs(1) - 1)
    def _():
        h = acc_ref[...] + r_ref[...]          # root term + (BN-folded) bias
        if final_layer:
            o_ref[...] = _masked_log_softmax(h, n_valid_out).astype(o_ref.dtype)
        else:
            # BN folded into W/b; dropout is identity in eval mode
            o_ref[...] = jnp.maximum(h, 0.0).astype(o_ref.dtype)


def sage_aggregate(a_p, p, r, *, final_layer, n_valid_out, tile):
    n_pad = a_p.shape[0]
    co = p.shape[1]
    grid = (n_pad // tile, n_pad // tile)
    kernel = functools.partial(_aggregate_kernel, final_layer=final_layer,
                               n_valid_out=n_valid_out)
    flops = 2 * n_pad * n_pad * co
    transc = n_pad * co if final_layer else 0
    bytes_acc = (n_pad * n_pad * 2                 # A (dominant stream)
                 + grid[0] * n_pad * co * 2        # P re-read per dst tile
                 + n_pad * co * 4                  # R
                 + n_pad * co * 2)                 # output (bf16)
    return pl.pallas_call(
        kernel,
        out_shape=jax.ShapeDtypeStruct((n_pad, co), jnp.bfloat16),
        grid_spec=pltpu.PrefetchScalarGridSpec(
            num_scalar_prefetch=0,
            grid=grid,
            in_specs=[
                pl.BlockSpec((tile, tile), lambda i, k: (i, k)),  # A tile
                pl.BlockSpec((tile, co), lambda i, k: (k, 0)),    # P (src rows)
                pl.BlockSpec((tile, co), lambda i, k: (i, 0)),    # R (dst rows, k-invariant)
            ],
            out_specs=pl.BlockSpec((tile, co), lambda i, k: (i, 0)),
            scratch_shapes=[pltpu.VMEM((tile, co), jnp.float32)],
        ),
        compiler_params=pltpu.CompilerParams(
            dimension_semantics=("parallel", "arbitrary")),
        cost_estimate=pl.CostEstimate(flops=int(flops),
                                      transcendentals=int(transc),
                                      bytes_accessed=int(bytes_acc)),
    )(a_p, p, r)


# ----------------------------------------------------------------------------
# Fully-fused whole-network kernel (small graphs: everything VMEM-resident)
# ----------------------------------------------------------------------------
def _fused_kernel(*refs, num_layers, n_valid_out):
    a_ref, x_ref = refs[0], refs[1]
    w_refs = refs[2:2 + 3 * num_layers]
    o_ref = refs[2 + 3 * num_layers]

    a = a_ref[...]                                   # (n_pad, n_pad) bf16
    h = x_ref[...]                                   # (n_pad, ci0)   bf16
    for li in range(num_layers):
        wl = w_refs[3 * li][...]
        wr = w_refs[3 * li + 1][...]
        b = w_refs[3 * li + 2][...]
        p = jnp.dot(h, wl, preferred_element_type=jnp.float32).astype(jnp.bfloat16)
        r = jnp.dot(h, wr, preferred_element_type=jnp.float32) + b
        z = jnp.dot(a, p, preferred_element_type=jnp.float32) + r
        if li < num_layers - 1:
            h = jnp.maximum(z, 0.0).astype(jnp.bfloat16)
        else:
            o_ref[...] = _masked_log_softmax(z, n_valid_out).astype(o_ref.dtype)


def _fused_vmem_bytes(n_pad, prepared):
    total = n_pad * n_pad * 2 + n_pad * prepared[0]["w_l"].shape[0] * 2
    for layer in prepared:
        ci, co = layer["w_l"].shape
        total += 2 * ci * co * 2 + co * 4
        total += n_pad * co * (2 + 4 + 4)            # p / r / z intermediates
    total += n_pad * prepared[-1]["w_l"].shape[1] * 2
    return total


def sage_forward_fused(prepared, x_p, a_p):
    num_layers = len(prepared)
    n_pad = a_p.shape[0]
    co_last = prepared[-1]["w_l"].shape[1]
    flat = []
    for layer in prepared:
        flat += [layer["w_l"], layer["w_r"], layer["b"]]
    kernel = functools.partial(_fused_kernel, num_layers=num_layers,
                               n_valid_out=prepared[-1]["c_out"])

    flops = 0
    for layer in prepared:
        ci, co = layer["w_l"].shape
        flops += 2 * 2 * n_pad * ci * co + 2 * n_pad * n_pad * co
    bytes_acc = sum(int(t.size) * t.dtype.itemsize for t in [a_p, x_p] + flat)
    bytes_acc += n_pad * co_last * 2

    n_in = 2 + len(flat)
    # Footprint is checked against a conservative budget (<= v7x scoped VMEM).
    return pl.pallas_call(
        kernel,
        out_shape=jax.ShapeDtypeStruct((n_pad, co_last), jnp.bfloat16),
        in_specs=[pl.BlockSpec(memory_space=pltpu.MemorySpace.VMEM)] * n_in,
        out_specs=pl.BlockSpec(memory_space=pltpu.MemorySpace.VMEM),
        cost_estimate=pl.CostEstimate(flops=int(flops),
                                      transcendentals=int(n_pad * co_last),
                                      bytes_accessed=int(bytes_acc)),
    )(a_p, x_p, *flat)


# ----------------------------------------------------------------------------
# Parameters (shapes match the PyTorch module) + one-time preparation
# ----------------------------------------------------------------------------
def init_sage_params(key, in_channels, hidden_channels, out_channels,
                     num_layers):
    dims = ([in_channels] + [hidden_channels] * (num_layers - 1)
            + [out_channels])
    params = {"convs": [], "bns": []}
    for li in range(num_layers):
        c_in, c_out = dims[li], dims[li + 1]
        key, k1, k2, k3 = jax.random.split(key, 4)
        scale = 1.0 / jnp.sqrt(jnp.float32(c_in))
        params["convs"].append({
            # stored transposed: (C_in, C_out), used as X @ W
            "w_l": jax.random.uniform(k1, (c_in, c_out), jnp.float32,
                                      -scale, scale),
            "w_r": jax.random.uniform(k2, (c_in, c_out), jnp.float32,
                                      -scale, scale),
            "b": jax.random.uniform(k3, (1, c_out), jnp.float32,
                                    -scale, scale),
        })
        if li < num_layers - 1:
            key, k4, k5 = jax.random.split(key, 3)
            params["bns"].append({
                "gamma": jnp.ones((1, c_out), jnp.float32),
                "beta": jnp.zeros((1, c_out), jnp.float32),
                "run_mean": 0.1 * jax.random.normal(k4, (1, c_out),
                                                    jnp.float32),
                "run_var": 1.0 + 0.1 * jax.random.uniform(k5, (1, c_out),
                                                          jnp.float32),
            })
    return params


def prepare_params(params, lane=LANE):
    """One-time: fold eval-mode BN into (W_l, W_r, b), pad to lane-dense
    multiples of 128, and cast weights to bf16 (bias stays f32)."""
    num_layers = len(params["convs"])
    prepared = []
    for li in range(num_layers):
        cv = params["convs"][li]
        w_l, w_r, b = cv["w_l"], cv["w_r"], cv["b"]
        if li < num_layers - 1:
            bn = params["bns"][li]
            s = bn["gamma"] * lax.rsqrt(bn["run_var"] + 1e-5)
            w_l = w_l * s
            w_r = w_r * s
            b = (b - bn["run_mean"]) * s + bn["beta"]
        ci_pad = _round_up(w_l.shape[0], lane)
        co_pad = _round_up(w_l.shape[1], lane)
        prepared.append({
            "w_l": _pad2d(w_l, ci_pad, co_pad).astype(jnp.bfloat16),
            "w_r": _pad2d(w_r, ci_pad, co_pad).astype(jnp.bfloat16),
            "b": _pad2d(b, 1, co_pad).astype(jnp.float32),
            "c_out": int(w_l.shape[1]),
        })
    return prepared


def build_normalized_adjacency(edge_index, num_nodes):
    """Dense row-normalized adjacency: A_norm[dst, src] = multiplicity/deg."""
    src = edge_index[0]
    dst = edge_index[1]
    a = jnp.zeros((num_nodes, num_nodes), jnp.float32)
    a = a.at[dst, src].add(1.0)
    deg = jnp.sum(a, axis=1, keepdims=True)
    inv_deg = jnp.where(deg > 0, 1.0 / deg, 0.0)
    return a * inv_deg


# ----------------------------------------------------------------------------
# Forward pass
# ----------------------------------------------------------------------------
def sage_forward(prepared, x, a_norm, *, tile_req=512, mode="auto",
                 return_hidden=False):
    n = x.shape[0]
    n_pad = _round_up(n, LANE)
    tile = _choose_tile(n_pad, tile_req)
    ci0 = prepared[0]["w_l"].shape[0]

    a_p = _pad2d(a_norm, n_pad, n_pad).astype(jnp.bfloat16)
    x_p = _pad2d(x, n_pad, ci0).astype(jnp.bfloat16)
    c_last = prepared[-1]["c_out"]

    if mode == "auto":
        mode = "fused" if _fused_vmem_bytes(n_pad, prepared) <= (20 << 20) \
            else "tiled"

    if mode == "fused":
        out = sage_forward_fused(prepared, x_p, a_p)[:n, :c_last]
        return (out, None) if return_hidden else out

    num_layers = len(prepared)
    hiddens = []
    h = x_p
    for li, layer in enumerate(prepared):
        p, r = sage_project(h, layer["w_l"], layer["w_r"], layer["b"],
                            tile=tile)
        h = sage_aggregate(a_p, p, r,
                           final_layer=(li == num_layers - 1),
                           n_valid_out=layer["c_out"], tile=tile)
        if return_hidden and li < num_layers - 1:
            hiddens.append(h[:n, :layer["c_out"]].astype(jnp.float32))
    out = h[:n, :c_last]
    return (out, hiddens) if return_hidden else out


def _reference_forward(params, x, a_norm):
    """Pure-JAX f32 reference (eval mode), for validation."""
    num_layers = len(params["convs"])
    h = x
    hiddens = []
    for li in range(num_layers - 1):
        cv = params["convs"][li]
        bn = params["bns"][li]
        h = (a_norm @ h) @ cv["w_l"] + h @ cv["w_r"] + cv["b"]
        h = ((h - bn["run_mean"]) * lax.rsqrt(bn["run_var"] + 1e-5)
             * bn["gamma"] + bn["beta"])
        h = jnp.maximum(h, 0.0)
        hiddens.append(h)
    cv = params["convs"][-1]
    h = (a_norm @ h) @ cv["w_l"] + h @ cv["w_r"] + cv["b"]
    return jax.nn.log_softmax(h, axis=-1), hiddens


# ----------------------------------------------------------------------------
if __name__ == "__main__":
    key = jax.random.PRNGKey(0)

    # Small graph: 256 nodes, 48 in-features, 64 hidden, 10 classes,
    # 3 layers, 2048 random edges.
    num_nodes = 256
    in_channels = 48
    hidden_channels = 64
    out_channels = 10
    num_layers = 3
    num_edges = 2048

    key, kx, ke, kp = jax.random.split(key, 4)
    x = jax.random.normal(kx, (num_nodes, in_channels), jnp.float32)
    edge_index = jax.random.randint(ke, (2, num_edges), 0, num_nodes,
                                    dtype=jnp.int32)

    a_norm = build_normalized_adjacency(edge_index, num_nodes)
    params = init_sage_params(kp, in_channels, hidden_channels, out_channels,
                              num_layers)
    prepared = prepare_params(params)

    # General tiled path (exports hidden activations for per-layer checks).
    out_tiled, hiddens = sage_forward(prepared, x, a_norm, mode="tiled",
                                      return_hidden=True)
    # Fully fused single-kernel path (small-graph fast path).
    out_fused = sage_forward(prepared, x, a_norm, mode="fused")
    jax.block_until_ready((out_tiled, out_fused))

    assert out_tiled.shape == (num_nodes, out_channels)
    assert out_fused.shape == (num_nodes, out_channels)

    ref, ref_hidden = _reference_forward(params, x, a_norm)
    out_t = out_tiled.astype(jnp.float32)
    out_f = out_fused.astype(jnp.float32)

    # rows of log_softmax must exp-sum to 1 (bf16 output tolerance)
    assert bool(jnp.allclose(jnp.sum(jnp.exp(out_t), axis=-1), 1.0, atol=5e-2))
    # fused and tiled paths agree (identical bf16 numerics, different tiling)
    assert bool(jnp.allclose(out_t, out_f, atol=3e-2))
    # tighter per-hidden-layer check against the f32 reference
    for h_k, h_r in zip(hiddens, ref_hidden):
        assert bool(jnp.allclose(h_k, h_r, atol=1e-1))
    # end-to-end check against the f32 reference (bf16 matmul tolerance)
    assert bool(jnp.allclose(out_t, ref, atol=1.5e-1))
    print("KERNEL_OK")
</pallas_src>

<mosaic_0001>
module attributes {stable_mosaic.version = 11 : i64} {
  func.func @_project_kernel(%arg0: i32, %arg1: memref<128x128xbf16, #tpu.memory_space<vmem>>, %arg2: memref<128x128xbf16, #tpu.memory_space<vmem>>, %arg3: memref<128x128xbf16, #tpu.memory_space<vmem>>, %arg4: memref<1x128xf32, #tpu.memory_space<vmem>>, %arg5: memref<128x128xbf16, #tpu.memory_space<vmem>>, %arg6: memref<128x128xf32, #tpu.memory_space<vmem>>) attributes {dimension_semantics = [#tpu.dimension_semantics<parallel>], iteration_bounds = array<i64: 2>, scalar_prefetch = 0 : i64, scratch_operands = 0 : i64, tpu.core_type = #tpu.core_type<tc>, window_params = [{transform_indices = @transform_0, window_bounds = array<i64: 128, 128>}, {pipeline_mode = #tpu.pipeline_mode<synchronous>, transform_indices = @transform_1, window_bounds = array<i64: 128, 128>}, {pipeline_mode = #tpu.pipeline_mode<synchronous>, transform_indices = @transform_2, window_bounds = array<i64: 128, 128>}, {pipeline_mode = #tpu.pipeline_mode<synchronous>, transform_indices = @transform_3, window_bounds = array<i64: 1, 128>}, {transform_indices = @transform_4, window_bounds = array<i64: 128, 128>}, {transform_indices = @transform_5, window_bounds = array<i64: 128, 128>}]} {
    %c0 = arith.constant 0 : index
    %c0_0 = arith.constant 0 : index
    %0 = vector.load %arg1[%c0, %c0_0] : memref<128x128xbf16, #tpu.memory_space<vmem>>, vector<128x128xbf16>
    %c0_1 = arith.constant 0 : index
    %c0_2 = arith.constant 0 : index
    %1 = vector.load %arg2[%c0_1, %c0_2] : memref<128x128xbf16, #tpu.memory_space<vmem>>, vector<128x128xbf16>
    %cst = arith.constant dense<0.000000e+00> : vector<128x128xf32>
    %2 = tpu.matmul %0, %1, %cst {dimension_numbers = #tpu.dot_dimension_numbers<[1], [0], [0], [1], [0, 0, 1, 1], [], []>} : vector<128x128xbf16>, vector<128x128xbf16>, vector<128x128xf32> -> vector<128x128xf32>
    %c0_3 = arith.constant 0 : index
    %c0_4 = arith.constant 0 : index
    %3 = vector.load %arg3[%c0_3, %c0_4] : memref<128x128xbf16, #tpu.memory_space<vmem>>, vector<128x128xbf16>
    %cst_5 = arith.constant dense<0.000000e+00> : vector<128x128xf32>
    %4 = tpu.matmul %0, %3, %cst_5 {dimension_numbers = #tpu.dot_dimension_numbers<[1], [0], [0], [1], [0, 0, 1, 1], [], []>} : vector<128x128xbf16>, vector<128x128xbf16>, vector<128x128xf32> -> vector<128x128xf32>
    %c0_6 = arith.constant 0 : index
    %c0_7 = arith.constant 0 : index
    %5 = vector.load %arg4[%c0_6, %c0_7] : memref<1x128xf32, #tpu.memory_space<vmem>>, vector<1x128xf32>
    %6 = vector.broadcast %5 : vector<1x128xf32> to vector<128x128xf32>
    %7 = arith.addf %4, %6 : vector<128x128xf32>
    %8 = arith.truncf %2 : vector<128x128xf32> to vector<128x128xbf16>
    %c0_8 = arith.constant 0 : index
    %c0_9 = arith.constant 0 : index
    %9 = vector.load %arg5[%c0_8, %c0_9] : memref<128x128xbf16, #tpu.memory_space<vmem>>, vector<128x128xbf16>
    tpu.vector_store %arg5[%c0_8, %c0_9], %8 {strides = array<i32>} : memref<128x128xbf16, #tpu.memory_space<vmem>>, vector<128x128xbf16>,
    %c0_10 = arith.constant 0 : index
    %c0_11 = arith.constant 0 : index
    %10 = vector.load %arg6[%c0_10, %c0_11] : memref<128x128xf32, #tpu.memory_space<vmem>>, vector<128x128xf32>
    tpu.vector_store %arg6[%c0_10, %c0_11], %7 {strides = array<i32>} : memref<128x128xf32, #tpu.memory_space<vmem>>, vector<128x128xf32>,
    return
  }
  func.func @transform_0(%arg0: i32) -> (i32, i32) {
    %c0_i32 = arith.constant 0 : i32
    %c0_i32_0 = arith.constant 0 : i32
    return %arg0, %c0_i32 : i32, i32
  }
  func.func @transform_1(%arg0: i32) -> (i32, i32) {
    %c0_i32 = arith.constant 0 : i32
    %c0_i32_0 = arith.constant 0 : i32
    %c0_i32_1 = arith.constant 0 : i32
    return %c0_i32, %c0_i32_0 : i32, i32
  }
  func.func @transform_2(%arg0: i32) -> (i32, i32) {
    %c0_i32 = arith.constant 0 : i32
    %c0_i32_0 = arith.constant 0 : i32
    %c0_i32_1 = arith.constant 0 : i32
    return %c0_i32, %c0_i32_0 : i32, i32
  }
  func.func @transform_3(%arg0: i32) -> (i32, i32) {
    %c0_i32 = arith.constant 0 : i32
    %c0_i32_0 = arith.constant 0 : i32
    %c0_i32_1 = arith.constant 0 : i32
    return %c0_i32, %c0_i32_0 : i32, i32
  }
  func.func @transform_4(%arg0: i32) -> (i32, i32) {
    %c0_i32 = arith.constant 0 : i32
    %c0_i32_0 = arith.constant 0 : i32
    return %arg0, %c0_i32 : i32, i32
  }
  func.func @transform_5(%arg0: i32) -> (i32, i32) {
    %c0_i32 = arith.constant 0 : i32
    %c0_i32_0 = arith.constant 0 : i32
    return %arg0, %c0_i32 : i32, i32
  }
}

</mosaic_0001>

<llo_original>
// kernel: tpu_custom_call.1
$region0: #{tpu_custom_call.1}
  #allocation0 [shape = 'u32[]', space=smem, size = 0x4, offset = 0x4, fixed_abs, tag = 'smem constant byte address 0x4 - core index']
  #allocation1 [shape = 'u32[144,128]{1,0:T(1,128)}', space=vmem, size = 0x12000, scoped, tag = 'internal scratch']
  %s0 = inlined_call_operand.hbm [shape: bf16[256,128], index: 0, kind: input, shape index: {}]
  %s1 = inlined_call_operand.hbm [shape: bf16[128,128], index: 1, kind: input, shape index: {}]
  %s2 = inlined_call_operand.hbm [shape: bf16[128,128], index: 2, kind: input, shape index: {}]
  %s3 = inlined_call_operand.vmem [shape: f32[1,128], index: 3, kind: input, shape index: {}]
  %s4 = inlined_call_operand.hbm [shape: bf16[256,128], index: 4, kind: output, shape index: {0}]
  %s5 = inlined_call_operand.hbm [shape: f32[256,128], index: 5, kind: output, shape index: {1}]
  %6 = xla_tuple %s4, %s5
  %s7 = sld [smem:[#allocation0]]
  $region69: #{tpu_custom_call.1} parent=0
    _
  %s9 = ssub.s32 1, %s7
  %s10 = scalar_select 0, %s9, %s7
  $region1: #{tpu_custom_call.1} parent=0
    #allocation2 [shape = 'u8[65536]{0}', space=vmem, size = 0x10000, scoped, tag = 'input window, operand 0']
    #allocation3 [shape = 's32[2]{0}', space=sflag, size = 0x8, scoped, tag = 'scoped memory for tpu_custom_call.1']
    #allocation4 [shape = 's32[2]{0}', space=sflag, size = 0x8, scoped, tag = 'scoped memory for tpu_custom_call.1']
    #allocation5 [shape = 'u8[32768]{0}', space=vmem, size = 0x8000, scoped, tag = 'input window, operand 1, single buffered']
    #allocation6 [shape = 's32[1]{0}', space=sflag, size = 0x4, scoped, tag = 'scoped memory for tpu_custom_call.1']
    #allocation7 [shape = 'u8[32768]{0}', space=vmem, size = 0x8000, scoped, tag = 'input window, operand 2, single buffered']
    #allocation8 [shape = 'u8[65536]{0}', space=vmem, size = 0x10000, scoped, tag = 'output window, operand 0']
    #allocation9 [shape = 'u8[131072]{0}', space=vmem, size = 0x20000, scoped, tag = 'output window, operand 1']
    #allocation10 [shape = 's32[2]{0}', space=sflag, size = 0x8, scoped, tag = 'scoped memory for tpu_custom_call.1']
    %11 = vsyncpa [#allocation3], 0
    %s12 = scalar_lea.sflag [#allocation3], 1
    %13 = vsyncpa %s12, 0
    %14 = vsyncpa [#allocation6], 0
    %15 = vsyncpa [#allocation4], 0
    %s16 = scalar_lea.sflag [#allocation4], 1
    %17 = vsyncpa %s16, 0
    %18 = vsyncpa [#allocation10], 0
    %s19 = scalar_lea.sflag [#allocation10], 1
    %20 = vsyncpa %s19, 0
    loop: start=0, step=1, limit=4
    $region2: #{tpu_custom_call.1} parent=1 // loop_pre_header
      _
    $region3: #{tpu_custom_call.1} parent=1 // loop_header
      %s22 = sphi 0, %s26
      %p23 = scmp.ge.s32.totalorder %s22, 4
      %s32 = sphi 0, %s34
      %s35 = sphi 0, %s32
      %s36 = sphi 0, %s35
      %s52 = sphi 0, %s36
      %s56 = sphi 0, %s56
      %s58 = sphi 0, %s56
      %s59 = sphi 0, %s58
      %s73 = sphi 0, %s59
      %s77 = sphi 0, %s77
      %s79 = sphi 0, %s77
      %s80 = sphi 0, %s79
      %s94 = sphi 0, %s80
      %s98 = sphi 0, %s98
      %s100 = sphi 0, %s98
      %s101 = sphi 0, %s100
      %s115 = sphi 0, %s101
      %s121 = sphi 0, %s123
      %s124 = sphi 0, %s121
      %s125 = sphi 0, %s124
      %s141 = sphi 0, %s125
      %s147 = sphi 0, %s149
      %s150 = sphi 0, %s147
      %s151 = sphi 0, %s150
      %s167 = sphi 0, %s151
    $region4: #{tpu_custom_call.1} parent=1 // loop_header_branch
      %25 = sbr.rel (%p23) target = $region8
    $region5: #{tpu_custom_call.1} parent=1 // loop_body
      %s27 = ssub.s32 %s22, 1
      %s28 = ssub.s32 %s22, 2
      %s29 = sadd.s32 %s22, 1
      %s30 = ssub.s32 %s22, %s29
      %p31 = scmp.eq.s32.totalorder %s30, 0
      %s33 = sadd.s32 %s32, 1
      %s34 = scalar_select %p31, %s32, %s33
      %p37 = pneg %p31
      %p38 = scmp.eq.s32.totalorder %s22, 1
      %p39 = por %p37, %p38
      %p40 = scmp.ne.s32.totalorder %s32, %s35
      %p41 = scmp.eq.s32.totalorder %s22, 0
      %p42 = por %p40, %p41
      %p43 = scmp.ne.s32.totalorder %s32, %s35
      %p44 = scmp.eq.s32.totalorder %s27, 1
      %p45 = por %p43, %p44
      %p46 = scmp.ne.s32.totalorder %s35, %s36
      %p47 = scmp.eq.s32.totalorder %s27, 0
      %p48 = por %p46, %p47
      %p49 = scmp.ne.s32.totalorder %s35, %s36
      %p50 = scmp.eq.s32.totalorder %s28, 1
      %p51 = por %p49, %p50
      %p53 = scmp.ne.s32.totalorder %s36, %s52
      %p54 = scmp.eq.s32.totalorder %s28, 0
      %p55 = por %p53, %p54
      %s57 = sadd.s32 %s56, 1
      %p60 = scmp.eq.s32.totalorder %s22, 1
      %p61 = scmp.ne.s32.totalorder %s56, %s58
      %p62 = scmp.eq.s32.totalorder %s22, 0
      %p63 = por %p61, %p62
      %p64 = scmp.ne.s32.totalorder %s56, %s58
      %p65 = scmp.eq.s32.totalorder %s27, 1
      %p66 = por %p64, %p65
      %p67 = scmp.ne.s32.totalorder %s58, %s59
      %p68 = scmp.eq.s32.totalorder %s27, 0
      %p69 = por %p67, %p68
      %p70 = scmp.ne.s32.totalorder %s58, %s59
      %p71 = scmp.eq.s32.totalorder %s28, 1
      %p72 = por %p70, %p71
      %p74 = scmp.ne.s32.totalorder %s59, %s73
      %p75 = scmp.eq.s32.totalorder %s28, 0
      %p76 = por %p74, %p75
      %s78 = sadd.s32 %s77, 1
      %p81 = scmp.eq.s32.totalorder %s22, 1
      %p82 = scmp.ne.s32.totalorder %s77, %s79
      %p83 = scmp.eq.s32.totalorder %s22, 0
      %p84 = por %p82, %p83
      %p85 = scmp.ne.s32.totalorder %s77, %s79
      %p86 = scmp.eq.s32.totalorder %s27, 1
      %p87 = por %p85, %p86
      %p88 = scmp.ne.s32.totalorder %s79, %s80
      %p89 = scmp.eq.s32.totalorder %s27, 0
      %p90 = por %p88, %p89
      %p91 = scmp.ne.s32.totalorder %s79, %s80
      %p92 = scmp.eq.s32.totalorder %s28, 1
      %p93 = por %p91, %p92
      %p95 = scmp.ne.s32.totalorder %s80, %s94
      %p96 = scmp.eq.s32.totalorder %s28, 0
      %p97 = por %p95, %p96
      %s99 = sadd.s32 %s98, 1
      %p102 = scmp.eq.s32.totalorder %s22, 1
      %p103 = scmp.ne.s32.totalorder %s98, %s100
      %p104 = scmp.eq.s32.totalorder %s22, 0
      %p105 = por %p103, %p104
      %p106 = scmp.ne.s32.totalorder %s98, %s100
      %p107 = scmp.eq.s32.totalorder %s27, 1
      %p108 = por %p106, %p107
      %p109 = scmp.ne.s32.totalorder %s100, %s101
      %p110 = scmp.eq.s32.totalorder %s27, 0
      %p111 = por %p109, %p110
      %p112 = scmp.ne.s32.totalorder %s100, %s101
      %p113 = scmp.eq.s32.totalorder %s28, 1
      %p114 = por %p112, %p113
      %p116 = scmp.ne.s32.totalorder %s101, %s115
      %p117 = scmp.eq.s32.totalorder %s28, 0
      %p118 = por %p116, %p117
      %s119 = ssub.s32 %s22, %s29
      %p120 = scmp.eq.s32.totalorder %s119, 0
      %s122 = sadd.s32 %s121, 1
      %s123 = scalar_select %p120, %s121, %s122
      %p126 = pneg %p120
      %p127 = scmp.eq.s32.totalorder %s22, 1
      %p128 = por %p126, %p127
      %p129 = scmp.ne.s32.totalorder %s121, %s124
      %p130 = scmp.eq.s32.totalorder %s22, 0
      %p131 = por %p129, %p130
      %p132 = scmp.ne.s32.totalorder %s121, %s124
      %p133 = scmp.eq.s32.totalorder %s27, 1
      %p134 = por %p132, %p133
      %p135 = scmp.ne.s32.totalorder %s124, %s125
      %p136 = scmp.eq.s32.totalorder %s27, 0
      %p137 = por %p135, %p136
      %p138 = scmp.ne.s32.totalorder %s124, %s125
      %p139 = scmp.eq.s32.totalorder %s28, 1
      %p140 = por %p138, %p139
      %p142 = scmp.ne.s32.totalorder %s125, %s141
      %p143 = scmp.eq.s32.totalorder %s28, 0
      %p144 = por %p142, %p143
      %s145 = ssub.s32 %s22, %s29
      %p146 = scmp.eq.s32.totalorder %s145, 0
      %s148 = sadd.s32 %s147, 1
      %s149 = scalar_select %p146, %s147, %s148
      %p152 = pneg %p146
      %p153 = scmp.eq.s32.totalorder %s22, 1
      %p154 = por %p152, %p153
      %p155 = scmp.ne.s32.totalorder %s147, %s150
      %p156 = scmp.eq.s32.totalorder %s22, 0
      %p157 = por %p155, %p156
      %p158 = scmp.ne.s32.totalorder %s147, %s150
      %p159 = scmp.eq.s32.totalorder %s27, 1
      %p160 = por %p158, %p159
      %p161 = scmp.ne.s32.totalorder %s150, %s151
      %p162 = scmp.eq.s32.totalorder %s27, 0
      %p163 = por %p161, %p162
      %p164 = scmp.ne.s32.totalorder %s150, %s151
      %p165 = scmp.eq.s32.totalorder %s28, 1
      %p166 = por %p164, %p165
      %p168 = scmp.ne.s32.totalorder %s151, %s167
      %p169 = scmp.eq.s32.totalorder %s28, 0
      %p170 = por %p168, %p169
      %p171 = scmp.le.s32.totalorder 1, %s22
      %p172 = scmp.lt.s32.totalorder %s22, 3
      %p173 = pnand %p171, %p172
      %p174 = pneg %p173
      // Predicated region
      $region9: #{tpu_custom_call.1} parent=5 // pred_check
        _
      $region10: #{tpu_custom_call.1} parent=5 // pred_check_branch
        %176 = sbr.rel (%p173) target = $region12
      $region11: #{tpu_custom_call.1} parent=5 // pred_region
        %s177 = ssub.s32 %s22, 1
        // Predicated region
        $region13: #{tpu_custom_call.1} parent=11 // pred_check
          %p178 = pneg %p69
        $region14: #{tpu_custom_call.1} parent=11 // pred_check_branch
          %180 = sbr.rel (%p178) target = $region16
        $region15: #{tpu_custom_call.1} parent=11 // pred_region
          %s182 = ssub.s32 1024, 1024
          %183 = vsyncadd [#allocation6], %s182
          %s184 = sshll.u32 [#allocation5], 4
          %s185 = int_to_ptr.vmem [resolvable:$true] %s184
          %190 = dma.hbm_to_vmem [thread:$0]  %s1, 1024, %s185, [#allocation6], 64, 64, 4
        $region16: #{tpu_custom_call.1} parent=11 // pred_fallthru
          _
        // Predicated region
        $region17: #{tpu_custom_call.1} parent=11 // pred_check
          %p191 = pneg %p90
        $region18: #{tpu_custom_call.1} parent=11 // pred_check_branch
          %193 = sbr.rel (%p191) target = $region20
        $region19: #{tpu_custom_call.1} parent=11 // pred_region
          %s195 = ssub.s32 1024, 1024
          %196 = vsyncadd [#allocation6], %s195
          %s197 = sshll.u32 [#allocation7], 4
          %s198 = int_to_ptr.vmem [resolvable:$true] %s197
          %203 = dma.hbm_to_vmem [thread:$0]  %s2, 1024, %s198, [#allocation6], 64, 64, 4
        $region20: #{tpu_custom_call.1} parent=11 // pred_fallthru
          _
        // Predicated region
        $region21: #{tpu_custom_call.1} parent=11 // pred_check
          %p204 = pneg %p111
        $region22: #{tpu_custom_call.1} parent=11 // pred_check_branch
          %206 = sbr.rel (%p204) target = $region24
        $region23: #{tpu_custom_call.1} parent=11 // pred_region
          _
        $region24: #{tpu_custom_call.1} parent=11 // pred_fallthru
          _
      $region12: #{tpu_custom_call.1} parent=5 // pred_fallthru
        _
      %p207 = scmp.lt.s32.totalorder %s22, 2
      // Predicated region
      $region25: #{tpu_custom_call.1} parent=5 // pred_check
        %p208 = pneg %p207
      $region26: #{tpu_custom_call.1} parent=5 // pred_check_branch
        %210 = sbr.rel (%p208) target = $region28
      $region27: #{tpu_custom_call.1} parent=5 // pred_region
        // Predicated region
        $region29: #{tpu_custom_call.1} parent=27 // pred_check
          %p211 = pneg %p42
        $region30: #{tpu_custom_call.1} parent=27 // pred_check_branch
          %213 = sbr.rel (%p211) target = $region32
        $region31: #{tpu_custom_call.1} parent=27 // pred_region
          %s214 = sand.u32 %s32, 1
          %s215 = scalar_lea.sflag [#allocation3], %s214
          %s216 = sand.u32 %s32, 1
          %s217 = smul.addr %s216, 64
          %s218 = scalar_lea.vmem [#allocation2], %s217
          %s219 = smul.u32 16, %s22
          %s221 = ssub.s32 1024, 1024
          %222 = vsyncadd %s215, %s221
          %s223 = smul.addr %s219, 64
          %s224 = scalar_lea.hbm %s0, %s223
          %s225 = sshll.u32 %s218, 4
          %s226 = int_to_ptr.vmem [resolvable:$true] %s225
          %231 = dma.hbm_to_vmem [thread:$0]  %s224, 1024, %s226, %s215, 64, 64, 4
        $region32: #{tpu_custom_call.1} parent=27 // pred_fallthru
          _
      $region28: #{tpu_custom_call.1} parent=5 // pred_fallthru
        _
      %p232 = scmp.le.s32.totalorder 1, %s22
      %p233 = scmp.lt.s32.totalorder %s22, 3
      %p234 = pnand %p232, %p233
      %p235 = pneg %p234
      // Predicated region
      $region33: #{tpu_custom_call.1} parent=5 // pred_check
        _
      $region34: #{tpu_custom_call.1} parent=5 // pred_check_branch
        %237 = sbr.rel (%p234) target = $region36
      $region35: #{tpu_custom_call.1} parent=5 // pred_region
        %s238 = ssub.s32 %s22, 1
        %s239 = sand.u32 %s35, 1
        %s240 = scalar_lea.sflag [#allocation3], %s239
        %s241 = sand.u32 %s35, 1
        %s242 = smul.addr %s241, 64
        %s243 = scalar_lea.vmem [#allocation2], %s242
        // Predicated region
        $region37: #{tpu_custom_call.1} parent=35 // pred_check
          %p244 = pneg %p48
        $region38: #{tpu_custom_call.1} parent=35 // pred_check_branch
          %246 = sbr.rel (%p244) target = $region40
        $region39: #{tpu_custom_call.1} parent=35 // pred_region
          %247 = dma.done %s240, 1024
        $region40: #{tpu_custom_call.1} parent=35 // pred_fallthru
          _
        // Predicated region
        $region41: #{tpu_custom_call.1} parent=35 // pred_check
          %p248 = pneg %p69
        $region42: #{tpu_custom_call.1} parent=35 // pred_check_branch
          %250 = sbr.rel (%p248) target = $region44
        $region43: #{tpu_custom_call.1} parent=35 // pred_region
          %251 = dma.done [#allocation6], 1024
        $region44: #{tpu_custom_call.1} parent=35 // pred_fallthru
          _
        // Predicated region
        $region45: #{tpu_custom_call.1} parent=35 // pred_check
          %p252 = pneg %p90
        $region46: #{tpu_custom_call.1} parent=35 // pred_check_branch
          %254 = sbr.rel (%p252) target = $region48
        $region47: #{tpu_custom_call.1} parent=35 // pred_region
          %255 = dma.done [#allocation6], 1024
        $region48: #{tpu_custom_call.1} parent=35 // pred_fallthru
          _
        %s256 = sand.u32 %s35, 1
        %s257 = scalar_lea.sflag [#allocation3], %s256
        %s258 = sand.u32 %s35, 1
        %s259 = smul.addr %s258, 64
        %s260 = scalar_lea.vmem [#allocation2], %s259
        %p261 = pneg %p48
        %p262 = pneg %p45
        %p263 = pneg %p69
        %p264 = pneg %p66
        %p265 = pneg %p90
        %p266 = pneg %p87
        %p267 = pneg %p111
        %p268 = pneg %p108
        %p269 = pneg %p137
        %p270 = pneg %p134
        %s271 = sand.u32 %s124, 1
        %s272 = scalar_lea.sflag [#allocation4], %s271
        %s273 = sand.u32 %s124, 1
        %s274 = smul.addr %s273, 64
        %s275 = scalar_lea.vmem [#allocation8], %s274
        %p276 = pneg %p163
        %p277 = pneg %p160
        %s278 = sand.u32 %s150, 1
        %s279 = scalar_lea.sflag [#allocation10], %s278
        %s280 = sand.u32 %s150, 1
        %s281 = smul.addr %s280, 128
        %s282 = scalar_lea.vmem [#allocation9], %s281
        %s283 = smul.u32 16, %s27
        %s284 = smul.u32 16, %s27
        %s285 = smul.u32 16, %s27
        %v287 = vld [vmem:[%s243] sm:$0xf]
        %v288 = vld [vmem:[%s243 + $0x4] sm:$0xf]
        %v289 = vld [vmem:[%s243 + $0x8] sm:$0xf]
        %v290 = vld [vmem:[%s243 + $0xc] sm:$0xf]
        %v291 = vld [vmem:[%s243 + $0x10] sm:$0xf]
        %v292 = vld [vmem:[%s243 + $0x14] sm:$0xf]
        %v293 = vld [vmem:[%s243 + $0x18] sm:$0xf]
        %v294 = vld [vmem:[%s243 + $0x1c] sm:$0xf]
        %v295 = vld [vmem:[%s243 + $0x20] sm:$0xf]
        %v296 = vld [vmem:[%s243 + $0x24] sm:$0xf]
        %v297 = vld [vmem:[%s243 + $0x28] sm:$0xf]
        %v298 = vld [vmem:[%s243 + $0x2c] sm:$0xf]
        %v299 = vld [vmem:[%s243 + $0x30] sm:$0xf]
        %v300 = vld [vmem:[%s243 + $0x34] sm:$0xf]
        %v301 = vld [vmem:[%s243 + $0x38] sm:$0xf]
        %v302 = vld [vmem:[%s243 + $0x3c] sm:$0xf]
        %v303 = vld [vmem:[#allocation5] sm:$0xf]
        %v304 = vld [vmem:[#allocation5 + $0x4] sm:$0xf]
        %v305 = vld [vmem:[#allocation5 + $0x8] sm:$0xf]
        %v306 = vld [vmem:[#allocation5 + $0xc] sm:$0xf]
        %v307 = vld [vmem:[#allocation5 + $0x10] sm:$0xf]
        %v308 = vld [vmem:[#allocation5 + $0x14] sm:$0xf]
        %v309 = vld [vmem:[#allocation5 + $0x18] sm:$0xf]
        %v310 = vld [vmem:[#allocation5 + $0x1c] sm:$0xf]
        %v311 = vld [vmem:[#allocation5 + $0x20] sm:$0xf]
        %v312 = vld [vmem:[#allocation5 + $0x24] sm:$0xf]
        %v313 = vld [vmem:[#allocation5 + $0x28] sm:$0xf]
        %v314 = vld [vmem:[#allocation5 + $0x2c] sm:$0xf]
        %v315 = vld [vmem:[#allocation5 + $0x30] sm:$0xf]
        %v316 = vld [vmem:[#allocation5 + $0x34] sm:$0xf]
        %v317 = vld [vmem:[#allocation5 + $0x38] sm:$0xf]
        %v318 = vld [vmem:[#allocation5 + $0x3c] sm:$0xf]
        %v335 = vunpack.c.l.b16 %v287
        %v336 = vunpack.c.l.b16 %v288
        %v337 = vunpack.c.l.b16 %v289
        %v338 = vunpack.c.l.b16 %v290
        %v339 = vunpack.c.l.b16 %v291
        %v340 = vunpack.c.l.b16 %v292
        %v341 = vunpack.c.l.b16 %v293
        %v342 = vunpack.c.l.b16 %v294
        %v343 = vunpack.c.l.b16 %v295
        %v344 = vunpack.c.l.b16 %v296
        %v345 = vunpack.c.l.b16 %v297
        %v346 = vunpack.c.l.b16 %v298
        %v347 = vunpack.c.l.b16 %v299
        %v348 = vunpack.c.l.b16 %v300
        %v349 = vunpack.c.l.b16 %v301
        %v350 = vunpack.c.l.b16 %v302
        %v351 = vpack.c.b16 %v336, %v335
        %v352 = vpack.c.b16 %v338, %v337
        %v353 = vpack.c.b16 %v340, %v339
        %v354 = vpack.c.b16 %v342, %v341
        %v355 = vpack.c.b16 %v344, %v343
        %v356 = vpack.c.b16 %v346, %v345
        %v357 = vpack.c.b16 %v348, %v347
        %v358 = vpack.c.b16 %v350, %v349
        %v383 = vunpack.c.l.b16 %v303
        %v384 = vunpack.c.l.b16 %v304
        %v385 = vunpack.c.l.b16 %v305
        %v386 = vunpack.c.l.b16 %v306
        %v387 = vunpack.c.l.b16 %v307
        %v388 = vunpack.c.l.b16 %v308
        %v389 = vunpack.c.l.b16 %v309
        %v390 = vunpack.c.l.b16 %v310
        %v391 = vunpack.c.l.b16 %v311
        %v392 = vunpack.c.l.b16 %v312
        %v393 = vunpack.c.l.b16 %v313
        %v394 = vunpack.c.l.b16 %v314
        %v395 = vunpack.c.l.b16 %v315
        %v396 = vunpack.c.l.b16 %v316
        %v397 = vunpack.c.l.b16 %v317
        %v398 = vunpack.c.l.b16 %v318
        %v399 = vpack.c.b16 %v384, %v383
        %v400 = vpack.c.b16 %v386, %v385
        %v401 = vpack.c.b16 %v388, %v387
        %v402 = vpack.c.b16 %v390, %v389
        %v403 = vpack.c.b16 %v392, %v391
        %v404 = vpack.c.b16 %v394, %v393
        %v405 = vpack.c.b16 %v396, %v395
        %v406 = vpack.c.b16 %v398, %v397
        %415 = vmatprep.subr.bf16.mxu0 0
        %416 = vmatpush1.bf16.msra.mxu0 %v399
        %417 = vmatprep.subr.bf16.mxu0 0
        %418 = vmatpush1.bf16.msra.mxu0 %v400
        %419 = vmatprep.subr.bf16.mxu0 0
        %420 = vmatpush1.bf16.msra.mxu0 %v401
        %421 = vmatprep.subr.bf16.mxu0 0
        %422 = vmatpush1.bf16.msra.mxu0 %v402
        %423 = vmatprep.subr.bf16.mxu0 0
        %424 = vmatpush1.bf16.msra.mxu0 %v403
        %425 = vmatprep.subr.bf16.mxu0 0
        %426 = vmatpush1.bf16.msra.mxu0 %v404
        %427 = vmatprep.subr.bf16.mxu0 0
        %428 = vmatpush1.bf16.msra.mxu0 %v405
        %429 = vmatprep.subr.bf16.mxu0 0
        %430 = vmatpush1.bf16.msra.mxu0 %v406
        %431 = vmatprep.subr.bf16.mxu0 0
        %432 = vmatpush1.bf16.msra.mxu0 0
        %433 = vmatprep.subr.bf16.mxu0 0
        %434 = vmatpush1.bf16.msra.mxu0 0
        %435 = vmatprep.subr.bf16.mxu0 0
        %436 = vmatpush1.bf16.msra.mxu0 0
        %437 = vmatprep.subr.bf16.mxu0 0
        %438 = vmatpush1.bf16.msra.mxu0 0
        %439 = vmatprep.subr.bf16.mxu0 0
        %440 = vmatpush1.bf16.msra.mxu0 0
        %441 = vmatprep.subr.bf16.mxu0 0
        %442 = vmatpush1.bf16.msra.mxu0 0
        %443 = vmatprep.subr.bf16.mxu0 0
        %444 = vmatpush1.bf16.msra.mxu0 0
        %445 = vmatprep.subr.bf16.mxu0 0
        %446 = vmatpush1.bf16.msra.mxu0 0
        %447 = vmatprep.mubr.bf16.mxu0 0
        %448 = vmatmul.mubr.bf16.gmra.mrb[0].mxu0 %v351
        %v449 = vpop.f32.mrb[0].mxu0
        %v450 = vadd.f32 0.0, %v449
        %v451 = vpop.f32.mrb[0].mxu0
        %v452 = vpop.f32.mrb[0].mxu0
        %v453 = vadd.f32 0.0, %v452
        %v454 = vpop.f32.mrb[0].mxu0
        %455 = vmatprep.mubr.bf16.mxu0 0
        %456 = vmatmul.mubr.bf16.gmra.mrb[0].mxu0 %v352
        %v457 = vpop.f32.mrb[0].mxu0
        %v458 = vadd.f32 0.0, %v457
        %v459 = vpop.f32.mrb[0].mxu0
        %v460 = vpop.f32.mrb[0].mxu0
        %v461 = vadd.f32 0.0, %v460
        %v462 = vpop.f32.mrb[0].mxu0
        %463 = vmatprep.mubr.bf16.mxu0 0
        %464 = vmatmul.mubr.bf16.gmra.mrb[0].mxu0 %v353
        %v465 = vpop.f32.mrb[0].mxu0
        %v466 = vadd.f32 0.0, %v465
        %v467 = vpop.f32.mrb[0].mxu0
        %v468 = vpop.f32.mrb[0].mxu0
        %v469 = vadd.f32 0.0, %v468
        %v470 = vpop.f32.mrb[0].mxu0
        %471 = vmatprep.mubr.bf16.mxu0 0
        %472 = vmatmul.mubr.bf16.gmra.mrb[0].mxu0 %v354
        %v473 = vpop.f32.mrb[0].mxu0
        %v474 = vadd.f32 0.0, %v473
        %v475 = vpop.f32.mrb[0].mxu0
        %v476 = vpop.f32.mrb[0].mxu0
        %v477 = vadd.f32 0.0, %v476
        %v478 = vpop.f32.mrb[0].mxu0
        %479 = vmatprep.mubr.bf16.mxu0 0
        %480 = vmatmul.mubr.bf16.gmra.mrb[0].mxu0 %v355
        %v481 = vpop.f32.mrb[0].mxu0
        %v482 = vadd.f32 0.0, %v481
        %v483 = vpop.f32.mrb[0].mxu0
        %v484 = vpop.f32.mrb[0].mxu0
        %v485 = vadd.f32 0.0, %v484
        %v486 = vpop.f32.mrb[0].mxu0
        %487 = vmatprep.mubr.bf16.mxu0 0
        %488 = vmatmul.mubr.bf16.gmra.mrb[0].mxu0 %v356
        %v489 = vpop.f32.mrb[0].mxu0
        %v490 = vadd.f32 0.0, %v489
        %v491 = vpop.f32.mrb[0].mxu0
        %v492 = vpop.f32.mrb[0].mxu0
        %v493 = vadd.f32 0.0, %v492
        %v494 = vpop.f32.mrb[0].mxu0
        %495 = vmatprep.mubr.bf16.mxu0 0
        %496 = vmatmul.mubr.bf16.gmra.mrb[0].mxu0 %v357
        %v497 = vpop.f32.mrb[0].mxu0
        %v498 = vadd.f32 0.0, %v497
        %v499 = vpop.f32.mrb[0].mxu0
        %v500 = vpop.f32.mrb[0].mxu0
        %v501 = vadd.f32 0.0, %v500
        %v502 = vpop.f32.mrb[0].mxu0
        %503 = vmatprep.mubr.bf16.mxu0 0
        %504 = vmatmul.mubr.bf16.gmra.mrb[0].mxu0 %v358
        %v505 = vpop.f32.mrb[0].mxu0
        %v506 = vadd.f32 0.0, %v505
        %v507 = vpop.f32.mrb[0].mxu0
        %v508 = vpop.f32.mrb[0].mxu0
        %v509 = vadd.f32 0.0, %v508
        %v510 = vpop.f32.mrb[0].mxu0
        %511 = vdwg.mxu0
        %v512 = vld [vmem:[#allocation7] sm:$0xf]
        %v513 = vld [vmem:[#allocation7 + $0x4] sm:$0xf]
        %v514 = vld [vmem:[#allocation7 + $0x8] sm:$0xf]
        %v515 = vld [vmem:[#allocation7 + $0xc] sm:$0xf]
        %v516 = vld [vmem:[#allocation7 + $0x10] sm:$0xf]
        %v517 = vld [vmem:[#allocation7 + $0x14] sm:$0xf]
        %v518 = vld [vmem:[#allocation7 + $0x18] sm:$0xf]
        %v519 = vld [vmem:[#allocation7 + $0x1c] sm:$0xf]
        %v520 = vld [vmem:[#allocation7 + $0x20] sm:$0xf]
        %v521 = vld [vmem:[#allocation7 + $0x24] sm:$0xf]
        %v522 = vld [vmem:[#allocation7 + $0x28] sm:$0xf]
        %v523 = vld [vmem:[#allocation7 + $0x2c] sm:$0xf]
        %v524 = vld [vmem:[#allocation7 + $0x30] sm:$0xf]
        %v525 = vld [vmem:[#allocation7 + $0x34] sm:$0xf]
        %v526 = vld [vmem:[#allocation7 + $0x38] sm:$0xf]
        %v527 = vld [vmem:[#allocation7 + $0x3c] sm:$0xf]
        %v528 = vld [vmem:[%s3] sm:$0x1]
        %v530 = vlaneseq
        %v531 = vshrl.u32 %v530, 7
        %v532 = vsub.s32 0, %v531
        %v533 = vrot.slane %v528, %v532
        %v551 = vunpack.c.l.b16 %v512
        %v552 = vunpack.c.l.b16 %v513
        %v553 = vunpack.c.l.b16 %v514
        %v554 = vunpack.c.l.b16 %v515
        %v555 = vunpack.c.l.b16 %v516
        %v556 = vunpack.c.l.b16 %v517
        %v557 = vunpack.c.l.b16 %v518
        %v558 = vunpack.c.l.b16 %v519
        %v559 = vunpack.c.l.b16 %v520
        %v560 = vunpack.c.l.b16 %v521
        %v561 = vunpack.c.l.b16 %v522
        %v562 = vunpack.c.l.b16 %v523
        %v563 = vunpack.c.l.b16 %v524
        %v564 = vunpack.c.l.b16 %v525
        %v565 = vunpack.c.l.b16 %v526
        %v566 = vunpack.c.l.b16 %v527
        %v567 = vpack.c.b16 %v552, %v551
        %v568 = vpack.c.b16 %v554, %v553
        %v569 = vpack.c.b16 %v556, %v555
        %v570 = vpack.c.b16 %v558, %v557
        %v571 = vpack.c.b16 %v560, %v559
        %v572 = vpack.c.b16 %v562, %v561
        %v573 = vpack.c.b16 %v564, %v563
        %v574 = vpack.c.b16 %v566, %v565
        %583 = vmatprep.subr.bf16.mxu0 0
        %584 = vmatpush1.bf16.msra.mxu0 %v567
        %585 = vmatprep.subr.bf16.mxu0 0
        %586 = vmatpush1.bf16.msra.mxu0 %v568
        %587 = vmatprep.subr.bf16.mxu0 0
        %588 = vmatpush1.bf16.msra.mxu0 %v569
        %589 = vmatprep.subr.bf16.mxu0 0
        %590 = vmatpush1.bf16.msra.mxu0 %v570
        %591 = vmatprep.subr.bf16.mxu0 0
        %592 = vmatpush1.bf16.msra.mxu0 %v571
        %593 = vmatprep.subr.bf16.mxu0 0
        %594 = vmatpush1.bf16.msra.mxu0 %v572
        %595 = vmatprep.subr.bf16.mxu0 0
        %596 = vmatpush1.bf16.msra.mxu0 %v573
        %597 = vmatprep.subr.bf16.mxu0 0
        %598 = vmatpush1.bf16.msra.mxu0 %v574
        %599 = vmatprep.subr.bf16.mxu0 0
        %600 = vmatpush1.bf16.msra.mxu0 0
        %601 = vmatprep.subr.bf16.mxu0 0
        %602 = vmatpush1.bf16.msra.mxu0 0
        %603 = vmatprep.subr.bf16.mxu0 0
        %604 = vmatpush1.bf16.msra.mxu0 0
        %605 = vmatprep.subr.bf16.mxu0 0
        %606 = vmatpush1.bf16.msra.mxu0 0
        %607 = vmatprep.subr.bf16.mxu0 0
        %608 = vmatpush1.bf16.msra.mxu0 0
        %609 = vmatprep.subr.bf16.mxu0 0
        %610 = vmatpush1.bf16.msra.mxu0 0
        %611 = vmatprep.subr.bf16.mxu0 0
        %612 = vmatpush1.bf16.msra.mxu0 0
        %613 = vmatprep.subr.bf16.mxu0 0
        %614 = vmatpush1.bf16.msra.mxu0 0
        %615 = vmatprep.mubr.bf16.mxu0 0
        %616 = vmatmul.mubr.bf16.gmra.mrb[0].mxu0 %v351
        %v617 = vpop.f32.mrb[0].mxu0
        %v618 = vadd.f32 %v533, %v617
        %v619 = vpop.f32.mrb[0].mxu0
        %v620 = vpop.f32.mrb[0].mxu0
        %v621 = vadd.f32 %v533, %v620
        %v622 = vpop.f32.mrb[0].mxu0
        %623 = vmatprep.mubr.bf16.mxu0 0
        %624 = vmatmul.mubr.bf16.gmra.mrb[0].mxu0 %v352
        %v625 = vpop.f32.mrb[0].mxu0
        %v626 = vadd.f32 %v533, %v625
        %v627 = vpop.f32.mrb[0].mxu0
        %v628 = vpop.f32.mrb[0].mxu0
        %v629 = vadd.f32 %v533, %v628
        %v630 = vpop.f32.mrb[0].mxu0
        %631 = vmatprep.mubr.bf16.mxu0 0
        %632 = vmatmul.mubr.bf16.gmra.mrb[0].mxu0 %v353
        %v633 = vpop.f32.mrb[0].mxu0
        %v634 = vadd.f32 %v533, %v633
        %v635 = vpop.f32.mrb[0].mxu0
        %v636 = vpop.f32.mrb[0].mxu0
        %v637 = vadd.f32 %v533, %v636
        %v638 = vpop.f32.mrb[0].mxu0
        %639 = vmatprep.mubr.bf16.mxu0 0
        %640 = vmatmul.mubr.bf16.gmra.mrb[0].mxu0 %v354
        %v641 = vpop.f32.mrb[0].mxu0
        %v642 = vadd.f32 %v533, %v641
        %v643 = vpop.f32.mrb[0].mxu0
        %v644 = vpop.f32.mrb[0].mxu0
        %v645 = vadd.f32 %v533, %v644
        %v646 = vpop.f32.mrb[0].mxu0
        %647 = vmatprep.mubr.bf16.mxu0 0
        %648 = vmatmul.mubr.bf16.gmra.mrb[0].mxu0 %v355
        %v649 = vpop.f32.mrb[0].mxu0
        %v650 = vadd.f32 %v533, %v649
        %v651 = vpop.f32.mrb[0].mxu0
        %v652 = vpop.f32.mrb[0].mxu0
        %v653 = vadd.f32 %v533, %v652
        %v654 = vpop.f32.mrb[0].mxu0
        %655 = vmatprep.mubr.bf16.mxu0 0
        %656 = vmatmul.mubr.bf16.gmra.mrb[0].mxu0 %v356
        %v657 = vpop.f32.mrb[0].mxu0
        %v658 = vadd.f32 %v533, %v657
        %v659 = vpop.f32.mrb[0].mxu0
        %v660 = vpop.f32.mrb[0].mxu0
        %v661 = vadd.f32 %v533, %v660
        %v662 = vpop.f32.mrb[0].mxu0
        %663 = vmatprep.mubr.bf16.mxu0 0
        %664 = vmatmul.mubr.bf16.gmra.mrb[0].mxu0 %v357
        %v665 = vpop.f32.mrb[0].mxu0
        %v666 = vadd.f32 %v533, %v665
        %v667 = vpop.f32.mrb[0].mxu0
        %v668 = vpop.f32.mrb[0].mxu0
        %v669 = vadd.f32 %v533, %v668
        %v670 = vpop.f32.mrb[0].mxu0
        %671 = vmatprep.mubr.bf16.mxu0 0
        %672 = vmatmul.mubr.bf16.gmra.mrb[0].mxu0 %v358
        %v673 = vpop.f32.mrb[0].mxu0
        %v674 = vadd.f32 %v533, %v673
        %v675 = vpop.f32.mrb[0].mxu0
        %v676 = vpop.f32.mrb[0].mxu0
        %v677 = vadd.f32 %v533, %v676
        %v678 = vpop.f32.mrb[0].mxu0
        %679 = vdwg.mxu0
        %v680 = vpack.c.bf16 %v453, %v450
        %v681 = vpack.c.bf16 %v461, %v458
        %v682 = vpack.c.bf16 %v469, %v466
        %v683 = vpack.c.bf16 %v477, %v474
        %v684 = vpack.c.bf16 %v485, %v482
        %v685 = vpack.c.bf16 %v493, %v490
        %v686 = vpack.c.bf16 %v501, %v498
        %v687 = vpack.c.bf16 %v509, %v506
        %v696 = vunpack.c.l.b16 %v680
        %v697 = vunpack.c.h.b16 %v680
        %v698 = vunpack.c.l.b16 %v681
        %v699 = vunpack.c.h.b16 %v681
        %v700 = vunpack.c.l.b16 %v682
        %v701 = vunpack.c.h.b16 %v682
        %v702 = vunpack.c.l.b16 %v683
        %v703 = vunpack.c.h.b16 %v683
        %v704 = vunpack.c.l.b16 %v684
        %v705 = vunpack.c.h.b16 %v684
        %v706 = vunpack.c.l.b16 %v685
        %v707 = vunpack.c.h.b16 %v685
        %v708 = vunpack.c.l.b16 %v686
        %v709 = vunpack.c.h.b16 %v686
        %v710 = vunpack.c.l.b16 %v687
        %v711 = vunpack.c.h.b16 %v687
        %v712 = vpack.c.b16 %v696, %v696
        %v713 = vpack.c.b16 %v697, %v697
        %v714 = vpack.c.b16 %v698, %v698
        %v715 = vpack.c.b16 %v699, %v699
        %v716 = vpack.c.b16 %v700, %v700
        %v717 = vpack.c.b16 %v701, %v701
        %v718 = vpack.c.b16 %v702, %v702
        %v719 = vpack.c.b16 %v703, %v703
        %v720 = vpack.c.b16 %v704, %v704
        %v721 = vpack.c.b16 %v705, %v705
        %v722 = vpack.c.b16 %v706, %v706
        %v723 = vpack.c.b16 %v707, %v707
        %v724 = vpack.c.b16 %v708, %v708
        %v725 = vpack.c.b16 %v709, %v709
        %v726 = vpack.c.b16 %v710, %v710
        %v727 = vpack.c.b16 %v711, %v711
        %744 = vst [vmem:[%s275] sm:$0xf] %v712
        %745 = vst [vmem:[%s275 + $0x4] sm:$0xf] %v713
        %746 = vst [vmem:[%s275 + $0x8] sm:$0xf] %v714
        %747 = vst [vmem:[%s275 + $0xc] sm:$0xf] %v715
        %748 = vst [vmem:[%s275 + $0x10] sm:$0xf] %v716
        %749 = vst [vmem:[%s275 + $0x14] sm:$0xf] %v717
        %750 = vst [vmem:[%s275 + $0x18] sm:$0xf] %v718
        %751 = vst [vmem:[%s275 + $0x1c] sm:$0xf] %v719
        %752 = vst [vmem:[%s275 + $0x20] sm:$0xf] %v720
        %753 = vst [vmem:[%s275 + $0x24] sm:$0xf] %v721
        %754 = vst [vmem:[%s275 + $0x28] sm:$0xf] %v722
        %755 = vst [vmem:[%s275 + $0x2c] sm:$0xf] %v723
        %756 = vst [vmem:[%s275 + $0x30] sm:$0xf] %v724
        %757 = vst [vmem:[%s275 + $0x34] sm:$0xf] %v725
        %758 = vst [vmem:[%s275 + $0x38] sm:$0xf] %v726
        %759 = vst [vmem:[%s275 + $0x3c] sm:$0xf] %v727
        %760 = vst [vmem:[%s282] sm:$0xff] %v618
        %761 = vst [vmem:[%s282 + $0x8] sm:$0xff] %v621
        %762 = vst [vmem:[%s282 + $0x10] sm:$0xff] %v626
        %763 = vst [vmem:[%s282 + $0x18] sm:$0xff] %v629
        %764 = vst [vmem:[%s282 + $0x20] sm:$0xff] %v634
        %765 = vst [vmem:[%s282 + $0x28] sm:$0xff] %v637
        %766 = vst [vmem:[%s282 + $0x30] sm:$0xff] %v642
        %767 = vst [vmem:[%s282 + $0x38] sm:$0xff] %v645
        %768 = vst [vmem:[%s282 + $0x40] sm:$0xff] %v650
        %769 = vst [vmem:[%s282 + $0x48] sm:$0xff] %v653
        %770 = vst [vmem:[%s282 + $0x50] sm:$0xff] %v658
        %771 = vst [vmem:[%s282 + $0x58] sm:$0xff] %v661
        %772 = vst [vmem:[%s282 + $0x60] sm:$0xff] %v666
        %773 = vst [vmem:[%s282 + $0x68] sm:$0xff] %v669
        %774 = vst [vmem:[%s282 + $0x70] sm:$0xff] %v674
        %775 = vst [vmem:[%s282 + $0x78] sm:$0xff] %v677
        %s776 = sand.u32 %s124, 1
        %s777 = scalar_lea.sflag [#allocation4], %s776
        %s778 = sand.u32 %s124, 1
        %s779 = smul.addr %s778, 64
        %s780 = scalar_lea.vmem [#allocation8], %s779
        %s781 = sand.u32 %s150, 1
        %s782 = scalar_lea.sflag [#allocation10], %s781
        %s783 = sand.u32 %s150, 1
        %s784 = smul.addr %s783, 128
        %s785 = scalar_lea.vmem [#allocation9], %s784
        // Predicated region
        $region49: #{tpu_custom_call.1} parent=35 // pred_check
          %p786 = pneg %p134
        $region50: #{tpu_custom_call.1} parent=35 // pred_check_branch
          %788 = sbr.rel (%p786) target = $region52
        $region51: #{tpu_custom_call.1} parent=35 // pred_region
          %s789 = smul.u32 16, %s27
          %s791 = ssub.s32 1024, 1024
          %792 = vsyncadd %s777, %s791
          %s793 = smul.addr %s789, 64
          %s794 = scalar_lea.hbm %s4, %s793
          %s795 = sshll.u32 %s780, 4
          %s796 = int_to_ptr.vmem [resolvable:$true] %s795
          %801 = dma.vmem_to_hbm [thread:$0]  %s796, 1024, %s794, %s777, 64, 64, 4
        $region52: #{tpu_custom_call.1} parent=35 // pred_fallthru
          _
        // Predicated region
        $region53: #{tpu_custom_call.1} parent=35 // pred_check
          %p802 = pneg %p160
        $region54: #{tpu_custom_call.1} parent=35 // pred_check_branch
          %804 = sbr.rel (%p802) target = $region56
        $region55: #{tpu_custom_call.1} parent=35 // pred_region
          %s805 = smul.u32 16, %s27
          %s807 = ssub.s32 2048, 2048
          %808 = vsyncadd %s782, %s807
          %s809 = smul.addr %s805, 128
          %s810 = scalar_lea.hbm %s5, %s809
          %s811 = sshll.u32 %s785, 4
          %s812 = int_to_ptr.vmem [resolvable:$true] %s811
          %817 = dma.vmem_to_hbm [thread:$0]  %s812, 2048, %s810, %s782, 128, 128, 8
        $region56: #{tpu_custom_call.1} parent=35 // pred_fallthru
          _
      $region36: #{tpu_custom_call.1} parent=5 // pred_fallthru
        _
      %p818 = scmp.le.s32.totalorder 2, %s22
      // Predicated region
      $region57: #{tpu_custom_call.1} parent=5 // pred_check
        %p819 = pneg %p818
      $region58: #{tpu_custom_call.1} parent=5 // pred_check_branch
        %821 = sbr.rel (%p819) target = $region60
      $region59: #{tpu_custom_call.1} parent=5 // pred_region
        %s822 = ssub.s32 %s22, 2
        // Predicated region
        $region61: #{tpu_custom_call.1} parent=59 // pred_check
          %p823 = pneg %p140
        $region62: #{tpu_custom_call.1} parent=59 // pred_check_branch
          %825 = sbr.rel (%p823) target = $region64
        $region63: #{tpu_custom_call.1} parent=59 // pred_region
          %s826 = sand.u32 %s125, 1
          %s827 = scalar_lea.sflag [#allocation4], %s826
          %s828 = sand.u32 %s125, 1
          %s829 = smul.addr %s828, 64
          %s830 = scalar_lea.vmem [#allocation8], %s829
          %831 = dma.done %s827, 1024
        $region64: #{tpu_custom_call.1} parent=59 // pred_fallthru
          _
        // Predicated region
        $region65: #{tpu_custom_call.1} parent=59 // pred_check
          %p832 = pneg %p166
        $region66: #{tpu_custom_call.1} parent=59 // pred_check_branch
          %834 = sbr.rel (%p832) target = $region68
        $region67: #{tpu_custom_call.1} parent=59 // pred_region
          %s835 = sand.u32 %s151, 1
          %s836 = scalar_lea.sflag [#allocation10], %s835
          %s837 = sand.u32 %s151, 1
          %s838 = smul.addr %s837, 128
          %s839 = scalar_lea.vmem [#allocation9], %s838
          %840 = dma.done %s836, 2048
        $region68: #{tpu_custom_call.1} parent=59 // pred_fallthru
          _
      $region60: #{tpu_custom_call.1} parent=5 // pred_fallthru
        _
    $region6: #{tpu_custom_call.1} parent=1 // loop_footer
      %s26 = sadd.s32 1, %s22
    $region7: #{tpu_custom_call.1} parent=1 // loop_footer_branch
      %21 = sbr.rel target = $region3
    $region8: #{tpu_custom_call.1} parent=1 // loop_exit
      _
    %841 = vsyncpa [#allocation3], 1
    %s842 = scalar_lea.sflag [#allocation3], 1
    %843 = vsyncpa %s842, 1
    %844 = vsyncpa [#allocation6], 1
    %845 = vsyncpa [#allocation4], 1
    %s846 = scalar_lea.sflag [#allocation4], 1
    %847 = vsyncpa %s846, 1
    %848 = vsyncpa [#allocation10], 1
    %s849 = scalar_lea.sflag [#allocation10], 1
    %850 = vsyncpa %s849, 1

</llo_original>
